<compile_context>
chip_gen: v6e
topology: v6e:2x2x1
jax: 0.10.0
libtpu: 0.0.40
codegen_flags: <defaults>
</compile_context>

<pallas_src>
import functools

import jax
import jax.numpy as jnp
from jax import lax
from jax.experimental import pallas as pl
from jax.experimental.pallas import tpu as pltpu


# ----------------------------------------------------------------------------
# Dense projection kernels (hoisted out of the recurrence — big MXU matmuls).
# ----------------------------------------------------------------------------
def _single_stream_proj_kernel(x_ref, w_ref, b_ref, o_ref):
    o_ref[...] = (jnp.dot(x_ref[...], w_ref[...],
                          preferred_element_type=jnp.float32) + b_ref[...])


def bidir_input_projection(x, w_stk, b_stk):
    """x:(M,K); w_stk:(2,K,N); b_stk:(2,1,N) -> (2,M,N).
    One pallas_call covers both directions (grid over direction, "parallel");
    the x block index is constant across the grid so it stays VMEM-resident.
    TODO(synk): tile over M (and consider bf16 weights) for production sizes."""
    M, K = x.shape
    N = w_stk.shape[2]
    return pl.pallas_call(
        _single_stream_proj_kernel,
        out_shape=jax.ShapeDtypeStruct((2, M, N), jnp.float32),
        grid=(2,),
        in_specs=[
            pl.BlockSpec((M, K), lambda d: (0, 0)),
            pl.BlockSpec((None, K, N), lambda d: (d, 0, 0)),
            pl.BlockSpec((None, 1, N), lambda d: (d, 0, 0)),
        ],
        out_specs=pl.BlockSpec((None, M, N), lambda d: (d, 0, 0)),
        compiler_params=pltpu.CompilerParams(dimension_semantics=("parallel",)),
    )(x, w_stk, b_stk)


def _dual_stream_proj_kernel(src_ref, w_ref, b_ref, o_ref, *, split):
    # src_ref: (2, M, K) two feature streams; w_ref: (2K, N).
    # Computes concat([src0, src1], axis=-1) @ W + b with the concat fused
    # into a split-weight dual matmul (no data movement for the concat).
    o_ref[...] = (
        jnp.dot(src_ref[0], w_ref[:split, :], preferred_element_type=jnp.float32)
        + jnp.dot(src_ref[1], w_ref[split:, :], preferred_element_type=jnp.float32)
        + b_ref[...])


def bidir_hidden_projection(y2, w_stk, b_stk, hidden_dim):
    """y2:(2,M,H) previous layer's fwd/bwd streams; w_stk:(2,2H,N); b_stk:(2,1,N).
    Produces GI for BOTH directions of the next layer in one pallas_call; the
    fwd/bwd concat is fused and y2 stays resident across the direction axis."""
    _, M, H = y2.shape
    N = w_stk.shape[2]
    kernel = functools.partial(_dual_stream_proj_kernel, split=hidden_dim)
    return pl.pallas_call(
        kernel,
        out_shape=jax.ShapeDtypeStruct((2, M, N), jnp.float32),
        grid=(2,),
        in_specs=[
            pl.BlockSpec((2, M, H), lambda d: (0, 0, 0)),
            pl.BlockSpec((None, 2 * hidden_dim, N), lambda d: (d, 0, 0)),
            pl.BlockSpec((None, 1, N), lambda d: (d, 0, 0)),
        ],
        out_specs=pl.BlockSpec((None, M, N), lambda d: (d, 0, 0)),
        compiler_params=pltpu.CompilerParams(dimension_semantics=("parallel",)),
    )(y2, w_stk, b_stk)


def final_fc(h_fin, fc_w, fc_b, hidden_dim):
    """h_fin:(2,B,H) final fwd/bwd hidden; fc_w:(2H,O); fc_b:(1,O).
    Fuses cat(h_fwd, h_bwd) into the fc4 matmul (dropout == identity in eval)."""
    _, B, H = h_fin.shape
    O = fc_w.shape[1]
    kernel = functools.partial(_dual_stream_proj_kernel, split=hidden_dim)
    return pl.pallas_call(
        kernel,
        out_shape=jax.ShapeDtypeStruct((B, O), jnp.float32),
        grid=(1,),
        in_specs=[
            pl.BlockSpec((2, B, H), lambda i: (0, 0, 0)),
            pl.BlockSpec((2 * hidden_dim, O), lambda i: (0, 0)),
            pl.BlockSpec((1, O), lambda i: (0, 0)),
        ],
        out_specs=pl.BlockSpec((B, O), lambda i: (0, 0)),
        compiler_params=pltpu.CompilerParams(dimension_semantics=("arbitrary",)),
    )(h_fin, fc_w, fc_b)


# ----------------------------------------------------------------------------
# Fused bidirectional GRU recurrence kernel.
# Grid = (2 directions, n_chunks). Direction axis is "parallel" (independent);
# chunk axis is "arbitrary" and carries the hidden state in VMEM scratch.
# Each grid step runs `chunk` timesteps with an unrolled in-kernel loop and
# also keeps the per-direction final hidden state in a resident output block.
# ----------------------------------------------------------------------------
def _bigru_recurrence_kernel(gi_ref, len_ref, whh_ref, bhn_ref,
                             y_ref, hfin_ref, h_ref,
                             *, hidden_dim, chunk, n_chunks):
    d = pl.program_id(0)          # 0 = forward, 1 = backward
    s = pl.program_id(1)          # chunk counter along this direction's walk

    @pl.when(s == 0)
    def _():
        h_ref[...] = jnp.zeros_like(h_ref)

    H = hidden_dim
    # Hoisted loads: reused for every timestep in the chunk.
    whh = whh_ref[...]            # (H, 3H)
    bhn = bhn_ref[...]            # (1, H)   n-gate hidden bias
    lengths = len_ref[...]        # (B, 1)   int32

    # Block index along time for this grid step (pure integer arithmetic:
    # fwd walks 0..n-1, bwd walks n-1..0).
    chunk_idx = d * (n_chunks - 1) + (1 - 2 * d) * s
    base_t = chunk_idx * chunk

    def step(j, h):
        # within-chunk position: fwd 0..chunk-1, bwd chunk-1..0
        i = d * (chunk - 1) + (1 - 2 * d) * j
        t = base_t + i                                   # absolute timestep
        gi = gi_ref[i]                                   # (B, 3H) precomputed x-proj
        gh = jnp.dot(h, whh, preferred_element_type=jnp.float32)   # (B, 3H)
        r = jax.nn.sigmoid(gi[:, 0:H] + gh[:, 0:H])
        z = jax.nn.sigmoid(gi[:, H:2 * H] + gh[:, H:2 * H])
        n = jnp.tanh(gi[:, 2 * H:] + r * (gh[:, 2 * H:] + bhn))
        h_new = (1.0 - z) * n + z * h
        h = jnp.where(lengths > t, h_new, h)             # freeze padded steps
        y_ref[i] = h
        return h

    h_final = lax.fori_loop(0, chunk, step, h_ref[...], unroll=True)
    h_ref[...] = h_final
    # hfin's block index only depends on d, so the value written at the LAST
    # chunk of each direction is what lands in HBM: the final hidden state.
    hfin_ref[...] = h_final


def run_bigru_recurrence(gi, lengths_2d, whh, bhn, *, chunk):
    """gi: (2, T_pad, B, 3H); whh: (2, H, 3H); bhn: (2, 1, H).
    Returns (y, h_fin): per-direction hidden sequences (2, T_pad, B, H) and
    per-direction final hidden states (2, B, H)."""
    _, T_pad, B, threeH = gi.shape
    H = whh.shape[1]
    n_chunks = T_pad // chunk

    kernel = functools.partial(_bigru_recurrence_kernel, hidden_dim=H,
                               chunk=chunk, n_chunks=n_chunks)

    def blk_idx(d, s):
        # fwd: chunk s; bwd: chunk n_chunks-1-s
        return (d, d * (n_chunks - 1) + (1 - 2 * d) * s, 0, 0)

    return pl.pallas_call(
        kernel,
        out_shape=(jax.ShapeDtypeStruct((2, T_pad, B, H), jnp.float32),
                   jax.ShapeDtypeStruct((2, B, H), jnp.float32)),
        grid=(2, n_chunks),
        in_specs=[
            pl.BlockSpec((None, chunk, B, threeH), blk_idx),           # GI
            pl.BlockSpec((B, 1), lambda d, s: (0, 0)),                 # lengths
            pl.BlockSpec((None, H, threeH), lambda d, s: (d, 0, 0)),   # W_hh
            pl.BlockSpec((None, 1, H), lambda d, s: (d, 0, 0)),        # b_hh (n)
        ],
        out_specs=(pl.BlockSpec((None, chunk, B, H), blk_idx),         # y
                   pl.BlockSpec((None, B, H), lambda d, s: (d, 0, 0))),  # h_fin
        scratch_shapes=[pltpu.VMEM((B, H), jnp.float32)],
        compiler_params=pltpu.CompilerParams(
            # direction axis is independent -> may be split across TensorCores
            # (megacore); chunk axis carries the recurrence.
            dimension_semantics=("parallel", "arbitrary")),
    )(gi, lengths_2d, whh, bhn)


# ----------------------------------------------------------------------------
# Full GRU_ELMO forward
# ----------------------------------------------------------------------------
def gru_elmo_forward(seqs, lengths, params, *, time_chunk=16):
    """seqs: (B, T, dim_input) batch-first (like PyTorch); lengths: (B,) int."""
    B, T, _ = seqs.shape
    x = jnp.transpose(seqs, (1, 0, 2)).astype(jnp.float32)     # time-major (T, B, F)
    lengths_2d = lengths.reshape(-1, 1).astype(jnp.int32)

    H = params["gru_layers"][0]["fwd"][1].shape[0]

    chunk = max(1, min(time_chunk, T))
    n_chunks = -(-T // chunk)
    T_pad = n_chunks * chunk
    if T_pad != T:
        # padded steps are masked out by the length check inside the kernel
        x = jnp.pad(x, ((0, T_pad - T), (0, 0), (0, 0)))

    y = None                                                   # (2, T_pad, B, H)
    h_fin = None                                               # (2, B, H)
    for li, layer in enumerate(params["gru_layers"]):
        wih_stk, whh_stk, bfold_stk, bhn_stk = [], [], [], []
        for name in ("fwd", "bwd"):
            w_ih, w_hh, b_ih, b_hh = layer[name]
            # fold r/z hidden biases into the hoisted input-projection bias
            # (n-gate hidden bias must stay inside r * (.) per GRU equations)
            b_fold = jnp.concatenate(
                [b_ih[:, :2 * H] + b_hh[:, :2 * H], b_ih[:, 2 * H:]], axis=1)
            wih_stk.append(w_ih)
            whh_stk.append(w_hh)
            bfold_stk.append(b_fold)
            bhn_stk.append(b_hh[:, 2 * H:])
        wih_stk = jnp.stack(wih_stk, axis=0)      # (2, F_in, 3H)
        whh_stk = jnp.stack(whh_stk, axis=0)      # (2, H, 3H)
        bfold_stk = jnp.stack(bfold_stk, axis=0)  # (2, 1, 3H)
        bhn_stk = jnp.stack(bhn_stk, axis=0)      # (2, 1, H)

        if li == 0:
            gi2 = bidir_input_projection(x.reshape(T_pad * B, -1),
                                         wih_stk, bfold_stk)
        else:
            # fuse the fwd/bwd feature concat of the previous layer's output
            # directly into the projection (split-weight dual matmul)
            gi2 = bidir_hidden_projection(y.reshape(2, T_pad * B, H),
                                          wih_stk, bfold_stk, H)
        gi = gi2.reshape(2, T_pad, B, 3 * H)
        # TODO(synk): the per-step output `y` of the LAST layer is unused by
        # the classifier head; a y-less variant would save its HBM writeback.
        y, h_fin = run_bigru_recurrence(gi, lengths_2d, whh_stk, bhn_stk,
                                        chunk=chunk)

    # Dropout layers are identity in eval mode; fc4 fused with the concat.
    return final_fc(h_fin, params["fc_w"], params["fc_b"], H)


# ----------------------------------------------------------------------------
# Pure-JAX reference (lax.scan) for validation
# ----------------------------------------------------------------------------
def _ref_dir(x, lengths, w_ih, w_hh, b_ih, b_hh, reverse):
    T, B, _ = x.shape
    H = w_hh.shape[0]

    def step(h, inp):
        x_t, t = inp
        gi = x_t @ w_ih + b_ih
        gh = h @ w_hh + b_hh
        r = jax.nn.sigmoid(gi[:, :H] + gh[:, :H])
        z = jax.nn.sigmoid(gi[:, H:2 * H] + gh[:, H:2 * H])
        n = jnp.tanh(gi[:, 2 * H:] + r * gh[:, 2 * H:])
        h_new = (1.0 - z) * n + z * h
        h = jnp.where((lengths > t)[:, None], h_new, h)
        return h, h

    ts = jnp.arange(T)
    xs = (x[::-1], ts[::-1]) if reverse else (x, ts)
    _, outs = lax.scan(step, jnp.zeros((B, H), jnp.float32), xs)
    return outs[::-1] if reverse else outs


def gru_elmo_ref(seqs, lengths, params):
    x = jnp.transpose(seqs, (1, 0, 2)).astype(jnp.float32)
    last_fwd = last_bwd = None
    for layer in params["gru_layers"]:
        fwd = _ref_dir(x, lengths, *layer["fwd"], reverse=False)
        bwd = _ref_dir(x, lengths, *layer["bwd"], reverse=True)
        last_fwd, last_bwd = fwd[-1], bwd[0]
        x = jnp.concatenate([fwd, bwd], axis=-1)
    h = jnp.concatenate([last_fwd, last_bwd], axis=-1)
    return h @ params["fc_w"] + params["fc_b"]


# ----------------------------------------------------------------------------
# Deterministic parameter init (matches PyTorch shapes; synthetic values)
# ----------------------------------------------------------------------------
def init_params(key, dim_input, hidden_dim, output_dim, n_layers, bidirectional=True):
    num_dir = 2 if bidirectional else 1
    bound = 1.0 / (hidden_dim ** 0.5)
    layers = []
    for l in range(n_layers):
        in_size = dim_input if l == 0 else hidden_dim * num_dir
        dirs = {}
        for name in (("fwd", "bwd") if bidirectional else ("fwd",)):
            key, k1, k2, k3, k4 = jax.random.split(key, 5)
            dirs[name] = (
                jax.random.uniform(k1, (in_size, 3 * hidden_dim), jnp.float32, -bound, bound),
                jax.random.uniform(k2, (hidden_dim, 3 * hidden_dim), jnp.float32, -bound, bound),
                jax.random.uniform(k3, (1, 3 * hidden_dim), jnp.float32, -bound, bound),
                jax.random.uniform(k4, (1, 3 * hidden_dim), jnp.float32, -bound, bound),
            )
        layers.append(dirs)
    key, kw, kb = jax.random.split(key, 3)
    fc_in = hidden_dim * num_dir
    fc_bound = 1.0 / (fc_in ** 0.5)
    fc_w = jax.random.uniform(kw, (fc_in, output_dim), jnp.float32, -fc_bound, fc_bound)
    fc_b = jax.random.uniform(kb, (1, output_dim), jnp.float32, -fc_bound, fc_bound)
    return {"gru_layers": layers, "fc_w": fc_w, "fc_b": fc_b}


if __name__ == "__main__":
    # Small shapes consistent with the module's forward.
    B, T = 2, 8
    dim_input, hidden_dim, output_dim, n_layers = 16, 32, 8, 2

    key = jax.random.PRNGKey(0)
    kx, kp = jax.random.split(key)
    seqs = jax.random.normal(kx, (B, T, dim_input), jnp.float32)   # (batch, seq, feat)
    lengths = jnp.array([8, 5], dtype=jnp.int32)                   # sorted descending

    params = init_params(kp, dim_input, hidden_dim, output_dim, n_layers,
                         bidirectional=True)

    out = gru_elmo_forward(seqs, lengths, params)
    out = jax.block_until_ready(out)
    assert out.shape == (B, output_dim)

    ref = jax.block_until_ready(gru_elmo_ref(seqs, lengths, params))
    assert jnp.allclose(out, ref, atol=1e-2, rtol=1e-2), (out, ref)

    print("KERNEL_OK")
</pallas_src>

<mosaic_0001>
module attributes {stable_mosaic.version = 11 : i64} {
  func.func @_single_stream_proj_kernel(%arg0: i32, %arg1: memref<16x16xf32, #tpu.memory_space<vmem>>, %arg2: memref<1x16x96xf32, #tpu.memory_space<vmem>>, %arg3: memref<1x1x96xf32, #tpu.memory_space<vmem>>, %arg4: memref<1x16x96xf32, #tpu.memory_space<vmem>>) attributes {dimension_semantics = [#tpu.dimension_semantics<parallel>], iteration_bounds = array<i64: 2>, scalar_prefetch = 0 : i64, scratch_operands = 0 : i64, tpu.core_type = #tpu.core_type<tc>, window_params = [{pipeline_mode = #tpu.pipeline_mode<synchronous>, transform_indices = @transform_0, window_bounds = array<i64: 16, 16>}, {transform_indices = @transform_1, window_bounds = array<i64: 1, 16, 96>}, {transform_indices = @transform_2, window_bounds = array<i64: 1, 1, 96>}, {transform_indices = @transform_3, window_bounds = array<i64: 1, 16, 96>}]} {
    %c0 = arith.constant 0 : index
    %c0_0 = arith.constant 0 : index
    %0 = vector.load %arg1[%c0, %c0_0] : memref<16x16xf32, #tpu.memory_space<vmem>>, vector<16x16xf32>
    %c0_1 = arith.constant 0 : index
    %c0_2 = arith.constant 0 : index
    %c0_3 = arith.constant 0 : index
    %1 = vector.load %arg2[%c0_1, %c0_2, %c0_3] : memref<1x16x96xf32, #tpu.memory_space<vmem>>, vector<1x16x96xf32>
    %2 = vector.shape_cast %1 : vector<1x16x96xf32> to vector<16x96xf32>
    %cst = arith.constant dense<0.000000e+00> : vector<16x96xf32>
    %3 = tpu.matmul %0, %2, %cst {dimension_numbers = #tpu.dot_dimension_numbers<[1], [0], [0], [1], [0, 0, 1, 1], [], []>} : vector<16x16xf32>, vector<16x96xf32>, vector<16x96xf32> -> vector<16x96xf32>
    %c0_4 = arith.constant 0 : index
    %c0_5 = arith.constant 0 : index
    %c0_6 = arith.constant 0 : index
    %4 = vector.load %arg3[%c0_4, %c0_5, %c0_6] : memref<1x1x96xf32, #tpu.memory_space<vmem>>, vector<1x1x96xf32>
    %5 = vector.shape_cast %4 : vector<1x1x96xf32> to vector<1x96xf32>
    %6 = vector.broadcast %5 : vector<1x96xf32> to vector<16x96xf32>
    %7 = arith.addf %3, %6 : vector<16x96xf32>
    %c0_7 = arith.constant 0 : index
    %c0_8 = arith.constant 0 : index
    %c0_9 = arith.constant 0 : index
    %8 = vector.load %arg4[%c0_7, %c0_8, %c0_9] : memref<1x16x96xf32, #tpu.memory_space<vmem>>, vector<1x16x96xf32>
    %9 = vector.shape_cast %8 : vector<1x16x96xf32> to vector<16x96xf32>
    %10 = vector.shape_cast %7 : vector<16x96xf32> to vector<1x16x96xf32>
    tpu.vector_store %arg4[%c0_7, %c0_8, %c0_9], %10 {strides = array<i32>} : memref<1x16x96xf32, #tpu.memory_space<vmem>>, vector<1x16x96xf32>,
    return
  }
  func.func @transform_0(%arg0: i32) -> (i32, i32) {
    %c0_i32 = arith.constant 0 : i32
    %c0_i32_0 = arith.constant 0 : i32
    %c0_i32_1 = arith.constant 0 : i32
    return %c0_i32, %c0_i32_0 : i32, i32
  }
  func.func @transform_1(%arg0: i32) -> (i32, i32, i32) {
    %c0_i32 = arith.constant 0 : i32
    %c0_i32_0 = arith.constant 0 : i32
    %c0_i32_1 = arith.constant 0 : i32
    return %arg0, %c0_i32, %c0_i32_0 : i32, i32, i32
  }
  func.func @transform_2(%arg0: i32) -> (i32, i32, i32) {
    %c0_i32 = arith.constant 0 : i32
    %c0_i32_0 = arith.constant 0 : i32
    %c0_i32_1 = arith.constant 0 : i32
    return %arg0, %c0_i32, %c0_i32_0 : i32, i32, i32
  }
  func.func @transform_3(%arg0: i32) -> (i32, i32, i32) {
    %c0_i32 = arith.constant 0 : i32
    %c0_i32_0 = arith.constant 0 : i32
    %c0_i32_1 = arith.constant 0 : i32
    return %arg0, %c0_i32, %c0_i32_0 : i32, i32, i32
  }
}

</mosaic_0001>

<llo_original>
// kernel: tpu_custom_call.1
$region0: #{tpu_custom_call.1}
  #allocation0 [shape = 'u32[]', space=smem, size = 0x4, offset = 0x4, fixed_abs, tag = 'smem constant byte address 0x4 - core index']
  #allocation1 [shape = 'u32[144,128]{1,0:T(1,128)}', space=vmem, size = 0x12000, scoped, tag = 'internal scratch']
  %s0 = inlined_call_operand.hbm [shape: f32[16,16], index: 0, kind: input, shape index: {}]
  %s1 = inlined_call_operand.hbm [shape: f32[2,16,96], index: 1, kind: input, shape index: {}]
  %s2 = inlined_call_operand.vmem [shape: f32[2,1,96], index: 2, kind: input, shape index: {}]
  %s3 = inlined_call_operand.hbm [shape: f32[2,16,96], index: 3, kind: output, shape index: {}]
  %s4 = sld [smem:[#allocation0]]
  $region53: #{tpu_custom_call.1} parent=0
    _
  %s6 = ssub.s32 1, %s4
  %s7 = scalar_select 0, %s6, %s4
  $region1: #{tpu_custom_call.1} parent=0
    #allocation2 [shape = 'u8[8192]{0}', space=vmem, size = 0x2000, scoped, tag = 'input window, operand 0, single buffered']
    #allocation3 [shape = 's32[2]{0}', space=sflag, size = 0x8, scoped, tag = 'scoped memory for tpu_custom_call.1']
    #allocation4 [shape = 's32[2]{0}', space=sflag, size = 0x8, scoped, tag = 'scoped memory for tpu_custom_call.1']
    #allocation5 [shape = 'u8[16384]{0}', space=vmem, size = 0x4000, scoped, tag = 'input window, operand 1']
    #allocation6 [shape = 's32[2]{0}', space=sflag, size = 0x8, scoped, tag = 'scoped memory for tpu_custom_call.1']
    #allocation7 [shape = 'u8[16384]{0}', space=vmem, size = 0x4000, scoped, tag = 'output window, operand 0']
    %8 = vsyncpa [#allocation3], 0
    %9 = vsyncpa [#allocation6], 0
    %s10 = scalar_lea.sflag [#allocation6], 1
    %11 = vsyncpa %s10, 0
    %12 = vsyncpa [#allocation4], 0
    %s13 = scalar_lea.sflag [#allocation4], 1
    %14 = vsyncpa %s13, 0
    loop: start=0, step=1, limit=4
    $region2: #{tpu_custom_call.1} parent=1 // loop_pre_header
      _
    $region3: #{tpu_custom_call.1} parent=1 // loop_header
      %s16 = sphi 0, %s20
      %p17 = scmp.ge.s32.totalorder %s16, 4
      %s24 = sphi 0, %s24
      %s26 = sphi 0, %s24
      %s27 = sphi 0, %s26
      %s41 = sphi 0, %s27
      %s47 = sphi 0, %s49
      %s50 = sphi 0, %s47
      %s51 = sphi 0, %s50
      %s67 = sphi 0, %s51
      %s73 = sphi 0, %s75
      %s76 = sphi 0, %s73
      %s77 = sphi 0, %s76
      %s93 = sphi 0, %s77
      %s99 = sphi 0, %s101
      %s102 = sphi 0, %s99
      %s103 = sphi 0, %s102
      %s119 = sphi 0, %s103
    $region4: #{tpu_custom_call.1} parent=1 // loop_header_branch
      %19 = sbr.rel (%p17) target = $region8
    $region5: #{tpu_custom_call.1} parent=1 // loop_body
      %s21 = ssub.s32 %s16, 1
      %s22 = ssub.s32 %s16, 2
      %s23 = sadd.s32 %s16, 1
      %s25 = sadd.s32 %s24, 1
      %p28 = scmp.eq.s32.totalorder %s16, 1
      %p29 = scmp.ne.s32.totalorder %s24, %s26
      %p30 = scmp.eq.s32.totalorder %s16, 0
      %p31 = por %p29, %p30
      %p32 = scmp.ne.s32.totalorder %s24, %s26
      %p33 = scmp.eq.s32.totalorder %s21, 1
      %p34 = por %p32, %p33
      %p35 = scmp.ne.s32.totalorder %s26, %s27
      %p36 = scmp.eq.s32.totalorder %s21, 0
      %p37 = por %p35, %p36
      %p38 = scmp.ne.s32.totalorder %s26, %s27
      %p39 = scmp.eq.s32.totalorder %s22, 1
      %p40 = por %p38, %p39
      %p42 = scmp.ne.s32.totalorder %s27, %s41
      %p43 = scmp.eq.s32.totalorder %s22, 0
      %p44 = por %p42, %p43
      %s45 = ssub.s32 %s16, %s23
      %p46 = scmp.eq.s32.totalorder %s45, 0
      %s48 = sadd.s32 %s47, 1
      %s49 = scalar_select %p46, %s47, %s48
      %p52 = pneg %p46
      %p53 = scmp.eq.s32.totalorder %s16, 1
      %p54 = por %p52, %p53
      %p55 = scmp.ne.s32.totalorder %s47, %s50
      %p56 = scmp.eq.s32.totalorder %s16, 0
      %p57 = por %p55, %p56
      %p58 = scmp.ne.s32.totalorder %s47, %s50
      %p59 = scmp.eq.s32.totalorder %s21, 1
      %p60 = por %p58, %p59
      %p61 = scmp.ne.s32.totalorder %s50, %s51
      %p62 = scmp.eq.s32.totalorder %s21, 0
      %p63 = por %p61, %p62
      %p64 = scmp.ne.s32.totalorder %s50, %s51
      %p65 = scmp.eq.s32.totalorder %s22, 1
      %p66 = por %p64, %p65
      %p68 = scmp.ne.s32.totalorder %s51, %s67
      %p69 = scmp.eq.s32.totalorder %s22, 0
      %p70 = por %p68, %p69
      %s71 = ssub.s32 %s16, %s23
      %p72 = scmp.eq.s32.totalorder %s71, 0
      %s74 = sadd.s32 %s73, 1
      %s75 = scalar_select %p72, %s73, %s74
      %p78 = pneg %p72
      %p79 = scmp.eq.s32.totalorder %s16, 1
      %p80 = por %p78, %p79
      %p81 = scmp.ne.s32.totalorder %s73, %s76
      %p82 = scmp.eq.s32.totalorder %s16, 0
      %p83 = por %p81, %p82
      %p84 = scmp.ne.s32.totalorder %s73, %s76
      %p85 = scmp.eq.s32.totalorder %s21, 1
      %p86 = por %p84, %p85
      %p87 = scmp.ne.s32.totalorder %s76, %s77
      %p88 = scmp.eq.s32.totalorder %s21, 0
      %p89 = por %p87, %p88
      %p90 = scmp.ne.s32.totalorder %s76, %s77
      %p91 = scmp.eq.s32.totalorder %s22, 1
      %p92 = por %p90, %p91
      %p94 = scmp.ne.s32.totalorder %s77, %s93
      %p95 = scmp.eq.s32.totalorder %s22, 0
      %p96 = por %p94, %p95
      %s97 = ssub.s32 %s16, %s23
      %p98 = scmp.eq.s32.totalorder %s97, 0
      %s100 = sadd.s32 %s99, 1
      %s101 = scalar_select %p98, %s99, %s100
      %p104 = pneg %p98
      %p105 = scmp.eq.s32.totalorder %s16, 1
      %p106 = por %p104, %p105
      %p107 = scmp.ne.s32.totalorder %s99, %s102
      %p108 = scmp.eq.s32.totalorder %s16, 0
      %p109 = por %p107, %p108
      %p110 = scmp.ne.s32.totalorder %s99, %s102
      %p111 = scmp.eq.s32.totalorder %s21, 1
      %p112 = por %p110, %p111
      %p113 = scmp.ne.s32.totalorder %s102, %s103
      %p114 = scmp.eq.s32.totalorder %s21, 0
      %p115 = por %p113, %p114
      %p116 = scmp.ne.s32.totalorder %s102, %s103
      %p117 = scmp.eq.s32.totalorder %s22, 1
      %p118 = por %p116, %p117
      %p120 = scmp.ne.s32.totalorder %s103, %s119
      %p121 = scmp.eq.s32.totalorder %s22, 0
      %p122 = por %p120, %p121
      %p123 = scmp.le.s32.totalorder 1, %s16
      %p124 = scmp.lt.s32.totalorder %s16, 3
      %p125 = pnand %p123, %p124
      %p126 = pneg %p125
      // Predicated region
      $region9: #{tpu_custom_call.1} parent=5 // pred_check
        _
      $region10: #{tpu_custom_call.1} parent=5 // pred_check_branch
        %128 = sbr.rel (%p125) target = $region12
      $region11: #{tpu_custom_call.1} parent=5 // pred_region
        %s129 = ssub.s32 %s16, 1
        // Predicated region
        $region13: #{tpu_custom_call.1} parent=11 // pred_check
          %p130 = pneg %p37
        $region14: #{tpu_custom_call.1} parent=11 // pred_check_branch
          %132 = sbr.rel (%p130) target = $region16
        $region15: #{tpu_custom_call.1} parent=11 // pred_region
          %s134 = ssub.s32 256, 256
          %135 = vsyncadd [#allocation3], %s134
          %s136 = sshll.u32 [#allocation2], 4
          %s137 = int_to_ptr.vmem [resolvable:$true] %s136
          %142 = dma.hbm_to_vmem [thread:$0]  %s0, 256, %s137, [#allocation3], 128, 128, 8
        $region16: #{tpu_custom_call.1} parent=11 // pred_fallthru
          _
      $region12: #{tpu_custom_call.1} parent=5 // pred_fallthru
        _
      %p143 = scmp.lt.s32.totalorder %s16, 2
      // Predicated region
      $region17: #{tpu_custom_call.1} parent=5 // pred_check
        %p144 = pneg %p143
      $region18: #{tpu_custom_call.1} parent=5 // pred_check_branch
        %146 = sbr.rel (%p144) target = $region20
      $region19: #{tpu_custom_call.1} parent=5 // pred_region
        // Predicated region
        $region21: #{tpu_custom_call.1} parent=19 // pred_check
          %p147 = pneg %p57
        $region22: #{tpu_custom_call.1} parent=19 // pred_check_branch
          %149 = sbr.rel (%p147) target = $region24
        $region23: #{tpu_custom_call.1} parent=19 // pred_region
          %s150 = sand.u32 %s47, 1
          %s151 = scalar_lea.sflag [#allocation6], %s150
          %s152 = sand.u32 %s47, 1
          %s153 = smul.addr %s152, 16
          %s154 = scalar_lea.vmem [#allocation5], %s153
          %s156 = ssub.s32 256, 256
          %157 = vsyncadd %s151, %s156
          %s158 = smul.addr %s16, 2
          %s159 = smul.addr %s158, 128
          %s160 = scalar_lea.hbm %s1, %s159
          %s161 = sshll.u32 %s154, 4
          %s162 = int_to_ptr.vmem [resolvable:$true] %s161
          %167 = dma.hbm_to_vmem [thread:$0]  %s160, 256, %s162, %s151, 128, 128, 8
        $region24: #{tpu_custom_call.1} parent=19 // pred_fallthru
          _
        // Predicated region
        $region25: #{tpu_custom_call.1} parent=19 // pred_check
          %p168 = pneg %p83
        $region26: #{tpu_custom_call.1} parent=19 // pred_check_branch
          %170 = sbr.rel (%p168) target = $region28
        $region27: #{tpu_custom_call.1} parent=19 // pred_region
          %p171 = scmp.lt.s32.totalorder %s16, 1
          %s172 = scalar_select %p171, %s16, 1
          %s173 = scalar_lea.vmem %s2, %s172
        $region28: #{tpu_custom_call.1} parent=19 // pred_fallthru
          _
      $region20: #{tpu_custom_call.1} parent=5 // pred_fallthru
        _
      %p174 = scmp.le.s32.totalorder 1, %s16
      %p175 = scmp.lt.s32.totalorder %s16, 3
      %p176 = pnand %p174, %p175
      %p177 = pneg %p176
      // Predicated region
      $region29: #{tpu_custom_call.1} parent=5 // pred_check
        _
      $region30: #{tpu_custom_call.1} parent=5 // pred_check_branch
        %179 = sbr.rel (%p176) target = $region32
      $region31: #{tpu_custom_call.1} parent=5 // pred_region
        %s180 = ssub.s32 %s16, 1
        // Predicated region
        $region33: #{tpu_custom_call.1} parent=31 // pred_check
          %p181 = pneg %p37
        $region34: #{tpu_custom_call.1} parent=31 // pred_check_branch
          %183 = sbr.rel (%p181) target = $region36
        $region35: #{tpu_custom_call.1} parent=31 // pred_region
          %184 = dma.done [#allocation3], 256
        $region36: #{tpu_custom_call.1} parent=31 // pred_fallthru
          _
        %s185 = sand.u32 %s50, 1
        %s186 = scalar_lea.sflag [#allocation6], %s185
        %s187 = sand.u32 %s50, 1
        %s188 = smul.addr %s187, 16
        %s189 = scalar_lea.vmem [#allocation5], %s188
        // Predicated region
        $region37: #{tpu_custom_call.1} parent=31 // pred_check
          %p190 = pneg %p63
        $region38: #{tpu_custom_call.1} parent=31 // pred_check_branch
          %192 = sbr.rel (%p190) target = $region40
        $region39: #{tpu_custom_call.1} parent=31 // pred_region
          %193 = dma.done %s186, 256
        $region40: #{tpu_custom_call.1} parent=31 // pred_fallthru
          _
        %p194 = pneg %p37
        %p195 = pneg %p34
        %s196 = sand.u32 %s50, 1
        %s197 = scalar_lea.sflag [#allocation6], %s196
        %s198 = sand.u32 %s50, 1
        %s199 = smul.addr %s198, 16
        %s200 = scalar_lea.vmem [#allocation5], %s199
        %p201 = pneg %p63
        %p202 = pneg %p60
        %p203 = scmp.lt.s32.totalorder %s21, 1
        %s204 = scalar_select %p203, %s21, 1
        %s205 = scalar_lea.vmem %s2, %s204
        %p206 = pneg %p89
        %p207 = pneg %p86
        %p208 = pneg %p115
        %p209 = pneg %p112
        %s210 = sand.u32 %s102, 1
        %s211 = scalar_lea.sflag [#allocation4], %s210
        %s212 = sand.u32 %s102, 1
        %s213 = smul.addr %s212, 16
        %s214 = scalar_lea.vmem [#allocation7], %s213
        %p215 = scmp.lt.s32.totalorder %s21, 1
        %s216 = scalar_select %p215, %s21, 1
        %s217 = scalar_lea.vmem %s2, %s216
        %v218 = vld [vmem:[#allocation2] sm:$0xff]
        %v219 = vld [vmem:[#allocation2 + $0x8] sm:$0xff]
        %v220 = vld [vmem:[%s189] sm:$0xff]
        %v221 = vld [vmem:[%s189 + $0x8] sm:$0xff]
        %v222 = vld [vmem:[%s217] sm:$0x1]
        %v224 = vlaneseq
        %v225 = vshrl.u32 %v224, 7
        %v226 = vsub.s32 0, %v225
        %v227 = vrot.slane %v222, %v226
        %vm229 = vcmask 130048
        %v231 = vsel %vm229, %v218, 0
        %v234 = vsel %vm229, %v219, 0
        %236 = vmatprep.subr.mxu0 0.0
        %237 = vmatpush1.msra.mxu0 0.0
        %238 = vmatprep.subr.mxu0 0.0
        %239 = vmatpush1.msra.mxu0 0.0
        %240 = vmatprep.subr.mxu0 0.0
        %241 = vmatpush1.msra.mxu0 0.0
        %242 = vmatprep.subr.mxu0 0.0
        %243 = vmatpush1.msra.mxu0 0.0
        %244 = vmatprep.subr.mxu0 0.0
        %245 = vmatpush1.msra.mxu0 0.0
        %246 = vmatprep.subr.mxu0 0.0
        %247 = vmatpush1.msra.mxu0 0.0
        %248 = vmatprep.subr.mxu0 0.0
        %249 = vmatpush1.msra.mxu0 0.0
        %250 = vmatprep.subr.mxu0 0.0
        %251 = vmatpush1.msra.mxu0 0.0
        %252 = vmatprep.subr.mxu0 0.0
        %253 = vmatpush1.msra.mxu0 0.0
        %254 = vmatprep.subr.mxu0 0.0
        %255 = vmatpush1.msra.mxu0 0.0
        %256 = vmatprep.subr.mxu0 0.0
        %257 = vmatpush1.msra.mxu0 0.0
        %258 = vmatprep.subr.mxu0 0.0
        %259 = vmatpush1.msra.mxu0 0.0
        %260 = vmatprep.subr.mxu0 0.0
        %261 = vmatpush1.msra.mxu0 0.0
        %262 = vmatprep.subr.mxu0 0.0
        %263 = vmatpush1.msra.mxu0 0.0
        %264 = vmatprep.subr.mxu0 0.0
        %265 = vmatpush1.msra.mxu0 %v221
        %266 = vmatprep.subr.mxu0 0.0
        %267 = vmatpush1.msra.mxu0 %v220
        %268 = vmatprep.subr.mxu0 0.0
        %269 = vmatpush2.msra.mxu0 0.0
        %270 = vmatprep.subr.mxu0 0.0
        %271 = vmatpush2.msra.mxu0 0.0
        %272 = vmatprep.subr.mxu0 0.0
        %273 = vmatpush2.msra.mxu0 0.0
        %274 = vmatprep.subr.mxu0 0.0
        %275 = vmatpush2.msra.mxu0 0.0
        %276 = vmatprep.subr.mxu0 0.0
        %277 = vmatpush2.msra.mxu0 0.0
        %278 = vmatprep.subr.mxu0 0.0
        %279 = vmatpush2.msra.mxu0 0.0
        %280 = vmatprep.subr.mxu0 0.0
        %281 = vmatpush2.msra.mxu0 0.0
        %282 = vmatprep.subr.mxu0 0.0
        %283 = vmatpush2.msra.mxu0 0.0
        %284 = vmatprep.subr.mxu0 0.0
        %285 = vmatpush2.msra.mxu0 0.0
        %286 = vmatprep.subr.mxu0 0.0
        %287 = vmatpush2.msra.mxu0 0.0
        %288 = vmatprep.subr.mxu0 0.0
        %289 = vmatpush2.msra.mxu0 0.0
        %290 = vmatprep.subr.mxu0 0.0
        %291 = vmatpush2.msra.mxu0 0.0
        %292 = vmatprep.subr.mxu0 0.0
        %293 = vmatpush2.msra.mxu0 0.0
        %294 = vmatprep.subr.mxu0 0.0
        %295 = vmatpush2.msra.mxu0 0.0
        %296 = vmatprep.subr.mxu0 0.0
        %297 = vmatpush2.msra.mxu0 0.0
        %298 = vmatprep.subr.mxu0 0.0
        %299 = vmatpush2.msra.mxu0 0.0
        %300 = vmatprep.mubr.f32.mxu0 0.0
        %301 = vmatmul.mubr.f32.gmra.mxu0 %v231
        %v302 = vpop.f32.mrf.mxu0
        %v303 = vadd.f32 %v227, %v302
        %v304 = vpop.f32.mrf.mxu0
        %305 = vmatprep.mubr.f32.mxu0 0.0
        %306 = vmatmul.mubr.f32.gmra.mxu0 %v234
        %v307 = vpop.f32.mrf.mxu0
        %v308 = vadd.f32 %v227, %v307
        %v309 = vpop.f32.mrf.mxu0
        %310 = vdwg.mxu0
        %vm311 = vcmask 785408
        %312 = vst.msk [vmem:[%s214] sm:$0xff] %vm311, %v303
        %313 = vst.msk [vmem:[%s214 + $0x8] sm:$0xff] %vm311, %v308
        %s314 = sand.u32 %s102, 1
        %s315 = scalar_lea.sflag [#allocation4], %s314
        %s316 = sand.u32 %s102, 1
        %s317 = smul.addr %s316, 16
        %s318 = scalar_lea.vmem [#allocation7], %s317
        // Predicated region
        $region41: #{tpu_custom_call.1} parent=31 // pred_check
          %p319 = pneg %p112
        $region42: #{tpu_custom_call.1} parent=31 // pred_check_branch
          %321 = sbr.rel (%p319) target = $region44
        $region43: #{tpu_custom_call.1} parent=31 // pred_region
          %s323 = ssub.s32 256, 256
          %324 = vsyncadd %s315, %s323
          %s325 = smul.addr %s21, 2
          %s326 = smul.addr %s325, 128
          %s327 = scalar_lea.hbm %s3, %s326
          %s328 = sshll.u32 %s318, 4
          %s329 = int_to_ptr.vmem [resolvable:$true] %s328
          %334 = dma.vmem_to_hbm [thread:$0]  %s329, 256, %s327, %s315, 128, 128, 8
        $region44: #{tpu_custom_call.1} parent=31 // pred_fallthru
          _
      $region32: #{tpu_custom_call.1} parent=5 // pred_fallthru
        _
      %p335 = scmp.le.s32.totalorder 2, %s16
      // Predicated region
      $region45: #{tpu_custom_call.1} parent=5 // pred_check
        %p336 = pneg %p335
      $region46: #{tpu_custom_call.1} parent=5 // pred_check_branch
        %338 = sbr.rel (%p336) target = $region48
      $region47: #{tpu_custom_call.1} parent=5 // pred_region
        %s339 = ssub.s32 %s16, 2
        // Predicated region
        $region49: #{tpu_custom_call.1} parent=47 // pred_check
          %p340 = pneg %p118
        $region50: #{tpu_custom_call.1} parent=47 // pred_check_branch
          %342 = sbr.rel (%p340) target = $region52
        $region51: #{tpu_custom_call.1} parent=47 // pred_region
          %s343 = sand.u32 %s103, 1
          %s344 = scalar_lea.sflag [#allocation4], %s343
          %s345 = sand.u32 %s103, 1
          %s346 = smul.addr %s345, 16
          %s347 = scalar_lea.vmem [#allocation7], %s346
          %348 = dma.done %s344, 256
        $region52: #{tpu_custom_call.1} parent=47 // pred_fallthru
          _
      $region48: #{tpu_custom_call.1} parent=5 // pred_fallthru
        _
    $region6: #{tpu_custom_call.1} parent=1 // loop_footer
      %s20 = sadd.s32 1, %s16
    $region7: #{tpu_custom_call.1} parent=1 // loop_footer_branch
      %15 = sbr.rel target = $region3
    $region8: #{tpu_custom_call.1} parent=1 // loop_exit
      _
    %349 = vsyncpa [#allocation3], 1
    %s350 = scalar_lea.sflag [#allocation3], 1
    %351 = vsyncpa %s350, 1
    %352 = vsyncpa [#allocation6], 1
    %s353 = scalar_lea.sflag [#allocation6], 1
    %354 = vsyncpa %s353, 1
    %355 = vsyncpa [#allocation4], 1
    %s356 = scalar_lea.sflag [#allocation4], 1
    %357 = vsyncpa %s356, 1

</llo_original>
